<compile_context>
chip_gen: v5e
topology: v5e:2x2
jax: 0.10.0
libtpu: 0.0.40
codegen_flags: <defaults>
</compile_context>

<pallas_src>
import functools

import jax
import jax.numpy as jnp
from jax.experimental import pallas as pl
from jax.experimental.pallas import tpu as pltpu


def _pooler_kernel(x_ref, valid_ref, out_ref, sum_acc, cnt_acc, max_acc,
                   *, chunk, n_chunks):
    """x_ref: (S_t, B_t, H_t) float; valid_ref: (S_t, B_t, 1) f32 (1.0 = valid);
    out_ref: (B_t, 3, H_t); scratch: f32 accumulators resident across the S axis."""
    s_idx = pl.program_id(2)

    @pl.when(s_idx == 0)
    def _init():
        sum_acc[...] = jnp.zeros_like(sum_acc)
        cnt_acc[...] = jnp.zeros_like(cnt_acc)
        max_acc[...] = jnp.full_like(max_acc, -jnp.inf)
        # Sequence position 0 lives in the first S tile.  The output block is
        # VMEM-resident across the whole S reduction, so write it directly
        # (no start_acc scratch needed).
        out_ref[:, 1, :] = x_ref[0].astype(out_ref.dtype)

    def _chunk_body(c, carry):
        off = pl.multiple_of(c * chunk, chunk)
        xc = x_ref[pl.ds(off, chunk), :, :].astype(jnp.float32)   # (chunk, B_t, H_t)
        vc = valid_ref[pl.ds(off, chunk), :, :]                   # (chunk, B_t, 1)
        sel = vc > 0.0                                            # gate every use of xc
        sum_acc[...] += jnp.sum(jnp.where(sel, xc, 0.0), axis=0)  # (B_t, H_t)
        cnt_acc[...] += jnp.sum(vc, axis=0)                       # (B_t, 1)
        max_acc[...] = jnp.maximum(
            max_acc[...], jnp.max(jnp.where(sel, xc, -jnp.inf), axis=0))
        return carry

    # Chunked reduction keeps f32 temporaries chunk-sized (not full-tile).
    jax.lax.fori_loop(0, n_chunks, _chunk_body, 0, unroll=n_chunks <= 8)

    @pl.when(s_idx == pl.num_programs(2) - 1)
    def _finalize():
        dt = out_ref.dtype
        # Exact divide (not approx reciprocal) to stay within 1e-5 of the
        # reference.  count == 0 (fully padded row) -> NaN mean, matching torch.
        out_ref[:, 0, :] = (sum_acc[...] / cnt_acc[...]).astype(dt)
        out_ref[:, 2, :] = max_acc[...].astype(dt)


def mean_start_max_pool(x, padding_mask):
    """x: (S, B, H) float, padding_mask: (S, B) bool (True = pad). Returns (B, 3H)."""
    S, B, H = x.shape
    # 1.0 where valid, 0.0 where padding; shaped (S, B, 1) so batch sits on
    # sublanes exactly like x (no per-step relayout), f32 to keep (8,128) tiling.
    valid = jnp.logical_not(padding_mask).astype(jnp.float32)[..., None]

    # --- per-generation VMEM budget ----------------------------------------
    kind = ""
    try:
        kind = jax.devices()[0].device_kind.lower()
    except Exception:  # pragma: no cover - defensive, keep conservative defaults
        pass
    if ("v5" in kind) or ("v6" in kind):
        x_tile_budget = 16 * 1024 * 1024          # 128 MiB physical VMEM
        vmem_limit = 96 * 1024 * 1024
    else:                                         # v7x (64 MiB physical) / unknown
        x_tile_budget = 5 * 1024 * 1024
        vmem_limit = None                         # default scoped limit is enough

    # --- tile selection -----------------------------------------------------
    # b_tile is the sublane dim of the x/valid blocks -> multiple of 8 or == B.
    if B <= 8:
        b_tile = B
    elif B < 16:
        b_tile = 8                                # ragged last B block is fine
    else:
        b_tile = min(128, (B // 2) // 8 * 8)      # >= 2 parallel B blocks
    nb = pl.cdiv(B, b_tile)

    # h_tile is the lane dim -> multiple of 128 or == H.  Split only when we
    # would otherwise have a single parallel block (v7x megacore utilization).
    h_tile = H
    if nb == 1 and H % 256 == 0:
        h_tile = H // 2
    nh = pl.cdiv(H, h_tile)

    # s_tile has no layout constraint (dim -3); keep it a multiple of the
    # in-kernel chunk so the fori_loop needs no remainder handling.
    row_bytes = b_tile * h_tile * x.dtype.itemsize
    max_rows = max(8, x_tile_budget // row_bytes)
    if S <= 8:
        s_tile, chunk = S, S
    else:
        s_cap = min(S, max_rows)                                          # >= 8
        chunk = max(8, min(256, (1 << 20) // (b_tile * h_tile * 4) // 8 * 8))
        chunk = min(chunk, s_cap // 8 * 8)
        s_tile = (s_cap // chunk) * chunk
    n_chunks = s_tile // chunk
    ns = pl.cdiv(S, s_tile)

    # Pad only the tiny validity mask so a ragged last S tile contributes
    # nothing; x itself is never padded (OOB reads are gated by valid == 0).
    s_pad = ns * s_tile
    if s_pad != S:
        valid = jnp.pad(valid, ((0, s_pad - S), (0, 0), (0, 0)))

    kernel = functools.partial(_pooler_kernel, chunk=chunk, n_chunks=n_chunks)

    out3 = pl.pallas_call(
        kernel,
        out_shape=jax.ShapeDtypeStruct((B, 3, H), x.dtype),
        grid_spec=pltpu.PrefetchScalarGridSpec(
            num_scalar_prefetch=0,
            grid=(nb, nh, ns),
            in_specs=[
                pl.BlockSpec((s_tile, b_tile, h_tile), lambda b, h, s: (s, b, h)),
                pl.BlockSpec((s_tile, b_tile, 1), lambda b, h, s: (s, b, 0)),
            ],
            # Output block index depends only on (b, h) -> resident across S.
            out_specs=pl.BlockSpec((b_tile, 3, h_tile), lambda b, h, s: (b, 0, h)),
            scratch_shapes=[
                pltpu.VMEM((b_tile, h_tile), jnp.float32),   # running sum
                pltpu.VMEM((b_tile, 1), jnp.float32),        # running valid count
                pltpu.VMEM((b_tile, h_tile), jnp.float32),   # running max
            ],
        ),
        compiler_params=pltpu.CompilerParams(
            dimension_semantics=("parallel", "parallel", "arbitrary"),
            vmem_limit_bytes=vmem_limit),
    )(x, valid)

    # concat([mean, start, max], -1) == reshape of the (B, 3, H) kernel output.
    return out3.reshape(B, 3 * H)


def _reference(x, padding_mask):
    """Pure-JAX mirror of the PyTorch forward (slice = 0)."""
    valid = ~padding_mask[..., None]                  # (S, B, 1)
    valid_f = valid.astype(x.dtype)
    mean = jnp.sum(x * valid_f, axis=0) / jnp.sum(valid_f, axis=0)
    start = x[0]
    mx = jnp.max(jnp.where(valid, x, -jnp.inf), axis=0)
    return jnp.concatenate([mean, start, mx], axis=-1)


if __name__ == "__main__":
    def run_case(S, B, H, lengths):
        key = jax.random.PRNGKey(0)
        x = jax.random.normal(key, (S, B, H), dtype=jnp.float32)
        positions = jnp.arange(S, dtype=jnp.int32)[:, None]              # (S, 1)
        padding_mask = positions >= jnp.asarray(lengths, jnp.int32)[None, :]  # True = pad
        out = jax.block_until_ready(mean_start_max_pool(x, padding_mask))
        ref = _reference(x, padding_mask)
        assert out.shape == (B, 3 * H), out.shape
        assert jnp.allclose(out, ref, atol=1e-5, rtol=1e-5), "mismatch vs reference"

    # Primary small case: seq=8, batch=4, hidden=32.
    run_case(8, 4, 32, [3, 4, 5, 8])
    # Ragged case exercising the cdiv grid + padded-mask path.
    run_case(13, 6, 32, [1, 4, 7, 10, 13, 2])

    print("KERNEL_OK")
</pallas_src>

<mosaic_0001>
module attributes {stable_mosaic.version = 11 : i64} {
  func.func @_pooler_kernel(%arg0: i32, %arg1: i32, %arg2: i32, %arg3: memref<8x4x32xf32, #tpu.memory_space<vmem>>, %arg4: memref<8x4x1xf32, #tpu.memory_space<vmem>>, %arg5: memref<4x3x32xf32, #tpu.memory_space<vmem>>, %arg6: memref<4x32xf32, #tpu.memory_space<vmem>>, %arg7: memref<4x1xf32, #tpu.memory_space<vmem>>, %arg8: memref<4x32xf32, #tpu.memory_space<vmem>>) attributes {dimension_semantics = [#tpu.dimension_semantics<parallel>, #tpu.dimension_semantics<parallel>, #tpu.dimension_semantics<arbitrary>], iteration_bounds = array<i64: 1, 1, 1>, scalar_prefetch = 0 : i64, scratch_operands = 3 : i64, tpu.core_type = #tpu.core_type<tc>, window_params = [{transform_indices = @transform_0, window_bounds = array<i64: 8, 4, 32>}, {transform_indices = @transform_1, window_bounds = array<i64: 8, 4, 1>}, {transform_indices = @transform_2, window_bounds = array<i64: 4, 3, 32>}]} {
    %c0_i32 = arith.constant 0 : i32
    %0 = arith.cmpi eq, %arg2, %c0_i32 : i32
    %1 = arith.extui %0 : i1 to i32
    %c0_i32_0 = arith.constant 0 : i32
    %2 = arith.cmpi ne, %1, %c0_i32_0 : i32
    scf.if %2 {
      %cst_24 = arith.constant 0.000000e+00 : f32
      %34 = vector.broadcast %cst_24 : f32 to vector<4x32xf32>
      %c0_25 = arith.constant 0 : index
      %c0_26 = arith.constant 0 : index
      %35 = vector.load %arg6[%c0_25, %c0_26] : memref<4x32xf32, #tpu.memory_space<vmem>>, vector<4x32xf32>
      tpu.vector_store %arg6[%c0_25, %c0_26], %34 {strides = array<i32>} : memref<4x32xf32, #tpu.memory_space<vmem>>, vector<4x32xf32>,
      %cst_27 = arith.constant 0.000000e+00 : f32
      %36 = vector.broadcast %cst_27 : f32 to vector<4x1xf32>
      %c0_28 = arith.constant 0 : index
      %c0_29 = arith.constant 0 : index
      %37 = vector.load %arg7[%c0_28, %c0_29] : memref<4x1xf32, #tpu.memory_space<vmem>>, vector<4x1xf32>
      tpu.vector_store %arg7[%c0_28, %c0_29], %36 {strides = array<i32>} : memref<4x1xf32, #tpu.memory_space<vmem>>, vector<4x1xf32>,
      %cst_30 = arith.constant 0xFF800000 : f32
      %38 = vector.broadcast %cst_30 : f32 to vector<4x32xf32>
      %c0_31 = arith.constant 0 : index
      %c0_32 = arith.constant 0 : index
      %39 = vector.load %arg8[%c0_31, %c0_32] : memref<4x32xf32, #tpu.memory_space<vmem>>, vector<4x32xf32>
      tpu.vector_store %arg8[%c0_31, %c0_32], %38 {strides = array<i32>} : memref<4x32xf32, #tpu.memory_space<vmem>>, vector<4x32xf32>,
      %c0_33 = arith.constant 0 : index
      %c0_34 = arith.constant 0 : index
      %c0_35 = arith.constant 0 : index
      %40 = vector.load %arg3[%c0_33, %c0_34, %c0_35] : memref<8x4x32xf32, #tpu.memory_space<vmem>>, vector<1x4x32xf32>
      %41 = vector.shape_cast %40 : vector<1x4x32xf32> to vector<4x32xf32>
      %c0_36 = arith.constant 0 : index
      %c1 = arith.constant 1 : index
      %c0_37 = arith.constant 0 : index
      %42 = vector.load %arg5[%c0_36, %c1, %c0_37] : memref<4x3x32xf32, #tpu.memory_space<vmem>>, vector<4x1x32xf32>
      %43 = vector.shape_cast %42 : vector<4x1x32xf32> to vector<4x32xf32>
      %44 = vector.shape_cast %41 : vector<4x32xf32> to vector<4x1x32xf32>
      tpu.vector_store %arg5[%c0_36, %c1, %c0_37], %44 {strides = array<i32>} : memref<4x3x32xf32, #tpu.memory_space<vmem>>, vector<4x1x32xf32>,
    } else {
    }
    %c0_i32_1 = arith.constant 0 : i32
    %c8_i32 = arith.constant 8 : i32
    %3 = arith.muli %c0_i32_1, %c8_i32 : i32
    %4 = tpu.assume_multiple %3, 8 : i32
    %5 = arith.index_cast %4 : i32 to index
    %c0 = arith.constant 0 : index
    %c0_2 = arith.constant 0 : index
    %6 = vector.load %arg3[%5, %c0, %c0_2] : memref<8x4x32xf32, #tpu.memory_space<vmem>>, vector<8x4x32xf32>
    %7 = arith.index_cast %4 : i32 to index
    %c0_3 = arith.constant 0 : index
    %c0_4 = arith.constant 0 : index
    %8 = vector.load %arg4[%7, %c0_3, %c0_4] : memref<8x4x1xf32, #tpu.memory_space<vmem>>, vector<8x4x1xf32>
    %cst = arith.constant 0.000000e+00 : f32
    %9 = vector.broadcast %cst : f32 to vector<8x4x1xf32>
    %10 = arith.cmpf ogt, %8, %9 : vector<8x4x1xf32>
    %c0_5 = arith.constant 0 : index
    %c0_6 = arith.constant 0 : index
    %11 = vector.load %arg6[%c0_5, %c0_6] : memref<4x32xf32, #tpu.memory_space<vmem>>, vector<4x32xf32>
    %cst_7 = arith.constant 0.000000e+00 : f32
    %12 = vector.shape_cast %10 : vector<8x4x1xi1> to vector<8x4x1xi1>
    %13 = vector.broadcast %12 : vector<8x4x1xi1> to vector<8x4x32xi1>
    %14 = vector.broadcast %cst_7 : f32 to vector<8x4x32xf32>
    %15 = arith.select %13, %6, %14 : vector<8x4x32xi1>, vector<8x4x32xf32>
    %cst_8 = arith.constant dense<0.000000e+00> : vector<4x32xf32>
    %16 = vector.multi_reduction <add>, %15, %cst_8 [0] : vector<8x4x32xf32> to vector<4x32xf32>
    %17 = arith.addf %11, %16 : vector<4x32xf32>
    %c0_9 = arith.constant 0 : index
    %c0_10 = arith.constant 0 : index
    %18 = vector.load %arg6[%c0_9, %c0_10] : memref<4x32xf32, #tpu.memory_space<vmem>>, vector<4x32xf32>
    tpu.vector_store %arg6[%c0_9, %c0_10], %17 {strides = array<i32>} : memref<4x32xf32, #tpu.memory_space<vmem>>, vector<4x32xf32>,
    %c0_11 = arith.constant 0 : index
    %c0_12 = arith.constant 0 : index
    %19 = vector.load %arg7[%c0_11, %c0_12] : memref<4x1xf32, #tpu.memory_space<vmem>>, vector<4x1xf32>
    %cst_13 = arith.constant dense<0.000000e+00> : vector<4x1xf32>
    %20 = vector.multi_reduction <add>, %8, %cst_13 [0] : vector<8x4x1xf32> to vector<4x1xf32>
    %21 = arith.addf %19, %20 : vector<4x1xf32>
    %c0_14 = arith.constant 0 : index
    %c0_15 = arith.constant 0 : index
    %22 = vector.load %arg7[%c0_14, %c0_15] : memref<4x1xf32, #tpu.memory_space<vmem>>, vector<4x1xf32>
    tpu.vector_store %arg7[%c0_14, %c0_15], %21 {strides = array<i32>} : memref<4x1xf32, #tpu.memory_space<vmem>>, vector<4x1xf32>,
    %c0_16 = arith.constant 0 : index
    %c0_17 = arith.constant 0 : index
    %23 = vector.load %arg8[%c0_16, %c0_17] : memref<4x32xf32, #tpu.memory_space<vmem>>, vector<4x32xf32>
    %cst_18 = arith.constant 0xFF800000 : f32
    %24 = vector.shape_cast %10 : vector<8x4x1xi1> to vector<8x4x1xi1>
    %25 = vector.broadcast %24 : vector<8x4x1xi1> to vector<8x4x32xi1>
    %26 = vector.broadcast %cst_18 : f32 to vector<8x4x32xf32>
    %27 = arith.select %25, %6, %26 : vector<8x4x32xi1>, vector<8x4x32xf32>
    %cst_19 = arith.constant dense<0xFF800000> : vector<4x32xf32>
    %28 = vector.multi_reduction <maximumf>, %27, %cst_19 [0] : vector<8x4x32xf32> to vector<4x32xf32>
    %29 = arith.maximumf %23, %28 : vector<4x32xf32>
    %c0_20 = arith.constant 0 : index
    %c0_21 = arith.constant 0 : index
    %30 = vector.load %arg8[%c0_20, %c0_21] : memref<4x32xf32, #tpu.memory_space<vmem>>, vector<4x32xf32>
    tpu.vector_store %arg8[%c0_20, %c0_21], %29 {strides = array<i32>} : memref<4x32xf32, #tpu.memory_space<vmem>>, vector<4x32xf32>,
    %c1_i32 = arith.constant 1 : i32
    %c0_i32_22 = arith.constant 0 : i32
    %31 = arith.cmpi eq, %arg2, %c0_i32_22 : i32
    %32 = arith.extui %31 : i1 to i32
    %c0_i32_23 = arith.constant 0 : i32
    %33 = arith.cmpi ne, %32, %c0_i32_23 : i32
    scf.if %33 {
      %c0_24 = arith.constant 0 : index
      %c0_25 = arith.constant 0 : index
      %34 = vector.load %arg6[%c0_24, %c0_25] : memref<4x32xf32, #tpu.memory_space<vmem>>, vector<4x32xf32>
      %c0_26 = arith.constant 0 : index
      %c0_27 = arith.constant 0 : index
      %35 = vector.load %arg7[%c0_26, %c0_27] : memref<4x1xf32, #tpu.memory_space<vmem>>, vector<4x1xf32>
      %36 = vector.broadcast %35 : vector<4x1xf32> to vector<4x32xf32>
      %37 = arith.divf %34, %36 : vector<4x32xf32>
      %c0_28 = arith.constant 0 : index
      %c0_29 = arith.constant 0 : index
      %c0_30 = arith.constant 0 : index
      %38 = vector.load %arg5[%c0_28, %c0_29, %c0_30] : memref<4x3x32xf32, #tpu.memory_space<vmem>>, vector<4x1x32xf32>
      %39 = vector.shape_cast %38 : vector<4x1x32xf32> to vector<4x32xf32>
      %40 = vector.shape_cast %37 : vector<4x32xf32> to vector<4x1x32xf32>
      tpu.vector_store %arg5[%c0_28, %c0_29, %c0_30], %40 {strides = array<i32>} : memref<4x3x32xf32, #tpu.memory_space<vmem>>, vector<4x1x32xf32>,
      %c0_31 = arith.constant 0 : index
      %c0_32 = arith.constant 0 : index
      %41 = vector.load %arg8[%c0_31, %c0_32] : memref<4x32xf32, #tpu.memory_space<vmem>>, vector<4x32xf32>
      %c0_33 = arith.constant 0 : index
      %c2 = arith.constant 2 : index
      %c0_34 = arith.constant 0 : index
      %42 = vector.load %arg5[%c0_33, %c2, %c0_34] : memref<4x3x32xf32, #tpu.memory_space<vmem>>, vector<4x1x32xf32>
      %43 = vector.shape_cast %42 : vector<4x1x32xf32> to vector<4x32xf32>
      %44 = vector.shape_cast %41 : vector<4x32xf32> to vector<4x1x32xf32>
      tpu.vector_store %arg5[%c0_33, %c2, %c0_34], %44 {strides = array<i32>} : memref<4x3x32xf32, #tpu.memory_space<vmem>>, vector<4x1x32xf32>,
    } else {
    }
    return
  }
  func.func @transform_0(%arg0: i32, %arg1: i32, %arg2: i32) -> (i32, i32, i32) {
    %c0_i32 = arith.constant 0 : i32
    return %arg2, %arg0, %arg1 : i32, i32, i32
  }
  func.func @transform_1(%arg0: i32, %arg1: i32, %arg2: i32) -> (i32, i32, i32) {
    %c0_i32 = arith.constant 0 : i32
    %c0_i32_0 = arith.constant 0 : i32
    return %arg2, %arg0, %c0_i32 : i32, i32, i32
  }
  func.func @transform_2(%arg0: i32, %arg1: i32, %arg2: i32) -> (i32, i32, i32) {
    %c0_i32 = arith.constant 0 : i32
    %c0_i32_0 = arith.constant 0 : i32
    return %arg0, %c0_i32, %arg1 : i32, i32, i32
  }
}

</mosaic_0001>

<llo_original>
// kernel: tpu_custom_call.1
$region0: #{tpu_custom_call.1}
  #allocation0 [shape = 'u32[]', space=smem, size = 0x4, offset = 0x4, fixed_abs, tag = 'smem constant byte address 0x4 - core index']
  #allocation1 [shape = 'u32[72,128]{1,0:T(1,128)}', space=vmem, size = 0x9000, scoped, tag = 'internal scratch']
  #allocation2 [shape = 'f32[4,32]{1,0:T(4,128)}', space=vmem, size = 0x800, scoped, tag = 'scratch operand']
  #allocation3 [shape = 'f32[4,1]{1,0:T(4,128)}', space=vmem, size = 0x800, scoped, tag = 'scratch operand']
  #allocation4 [shape = 'f32[4,32]{1,0:T(4,128)}', space=vmem, size = 0x800, scoped, tag = 'scratch operand']
  %s0 = inlined_call_operand.vmem [shape: f32[8,4,32], index: 0, kind: input, shape index: {}]
  %s1 = inlined_call_operand.vmem [shape: f32[8,4,1], index: 1, kind: input, shape index: {}]
  %s2 = inlined_call_operand.vmem [shape: f32[4,3,32], index: 2, kind: output, shape index: {}]
  %s3 = sld [smem:[#allocation0]]
  $region26: #{tpu_custom_call.1} parent=0
    _
  %s5 = ssub.s32 1, %s3
  %s6 = scalar_select 0, %s5, %s3
  // Predicated region
  $region2: #{tpu_custom_call.1} parent=0 // pred_check
    _
  $region3: #{tpu_custom_call.1} parent=0 // pred_check_branch
    %8 = sbr.rel (0) target = $region5
  $region4: #{tpu_custom_call.1} parent=0 // pred_region
    _
  $region5: #{tpu_custom_call.1} parent=0 // pred_fallthru
    _
  // Predicated region
  $region6: #{tpu_custom_call.1} parent=0 // pred_check
    _
  $region7: #{tpu_custom_call.1} parent=0 // pred_check_branch
    %10 = sbr.rel (0) target = $region9
  $region8: #{tpu_custom_call.1} parent=0 // pred_region
    _
  $region9: #{tpu_custom_call.1} parent=0 // pred_fallthru
    _
  %p11 = scmp.eq.s32.totalorder 0, 0
  // Predicated region
  $region10: #{tpu_custom_call.1} parent=0 // pred_check
    %p12 = pneg %p11
  $region11: #{tpu_custom_call.1} parent=0 // pred_check_branch
    %14 = sbr.rel (%p12) target = $region13
  $region12: #{tpu_custom_call.1} parent=0 // pred_region
    %vm15 = vcmask 257024
    %16 = vst.msk [vmem:[#allocation2] sm:$0xf] %vm15, 0.0
    %vm17 = vcmask 3072
    %18 = vst.msk [vmem:[#allocation3] sm:$0xf] %vm17, 0.0
    %19 = vst.msk [vmem:[#allocation4] sm:$0xf] %vm15, -inf
    %v20 = vld [vmem:[%s0] sm:$0xf]
    %v22 = vrot.slane %v20, 1
    %v23 = vrot.slane %v20, 2
    %v24 = vrot.slane %v20, 3
    %vm28 = vcmask 253952
    %29 = vst.msk [vmem:[%s2 + $0x1] sm:$0x1] %vm28, %v20
    %30 = vst.msk [vmem:[%s2 + $0x5] sm:$0x1] %vm28, %v22
    %31 = vst.msk [vmem:[%s2 + $0x9] sm:$0x1] %vm28, %v23
    %32 = vst.msk [vmem:[%s2 + $0xd] sm:$0x1] %vm28, %v24
  $region13: #{tpu_custom_call.1} parent=0 // pred_fallthru
    _
  %s33 = smul.u32 0, 4
  %s34 = scalar_lea.vmem %s0, %s33
  %v35 = vld [vmem:[%s34] sm:$0xf]
  %v36 = vld [vmem:[%s34 + $0x4] sm:$0xf]
  %v37 = vld [vmem:[%s34 + $0x8] sm:$0xf]
  %v38 = vld [vmem:[%s34 + $0xc] sm:$0xf]
  %v39 = vld [vmem:[%s34 + $0x10] sm:$0xf]
  %v40 = vld [vmem:[%s34 + $0x14] sm:$0xf]
  %v41 = vld [vmem:[%s34 + $0x18] sm:$0xf]
  %v42 = vld [vmem:[%s34 + $0x1c] sm:$0xf]
  %s43 = scalar_lea.vmem %s1, %s33
  %v44 = vld [vmem:[%s43] sm:$0xf]
  %v45 = vld [vmem:[%s43 + $0x4] sm:$0xf]
  %v46 = vld [vmem:[%s43 + $0x8] sm:$0xf]
  %v47 = vld [vmem:[%s43 + $0xc] sm:$0xf]
  %v48 = vld [vmem:[%s43 + $0x10] sm:$0xf]
  %v49 = vld [vmem:[%s43 + $0x14] sm:$0xf]
  %v50 = vld [vmem:[%s43 + $0x18] sm:$0xf]
  %v51 = vld [vmem:[%s43 + $0x1c] sm:$0xf]
  %vm52 = vcmp.gt.f32.partialorder %v44, 0.0
  %vm53 = vcmp.gt.f32.partialorder %v45, 0.0
  %vm54 = vcmp.gt.f32.partialorder %v46, 0.0
  %vm55 = vcmp.gt.f32.partialorder %v47, 0.0
  %vm56 = vcmp.gt.f32.partialorder %v48, 0.0
  %vm57 = vcmp.gt.f32.partialorder %v49, 0.0
  %vm58 = vcmp.gt.f32.partialorder %v50, 0.0
  %vm59 = vcmp.gt.f32.partialorder %v51, 0.0
  %v60 = vld [vmem:[#allocation2] sm:$0xf]
  %v61 = vsel %vm52, 1, 0
  %v62 = vsel %vm53, 1, 0
  %v63 = vsel %vm54, 1, 0
  %v64 = vsel %vm55, 1, 0
  %v65 = vsel %vm56, 1, 0
  %v66 = vsel %vm57, 1, 0
  %v67 = vsel %vm58, 1, 0
  %v68 = vsel %vm59, 1, 0
  %69 = vset.pattern.permute.xlu0 0
  %70 = vperm.xlu0 %69, %v61
  %v71 = vpop.permute.xlu0 %70
  %72 = vset.pattern.permute.xlu0 0
  %73 = vperm.xlu0 %72, %v62
  %v74 = vpop.permute.xlu0 %73
  %75 = vset.pattern.permute.xlu0 0
  %76 = vperm.xlu0 %75, %v63
  %v77 = vpop.permute.xlu0 %76
  %78 = vset.pattern.permute.xlu0 0
  %79 = vperm.xlu0 %78, %v64
  %v80 = vpop.permute.xlu0 %79
  %81 = vset.pattern.permute.xlu0 0
  %82 = vperm.xlu0 %81, %v65
  %v83 = vpop.permute.xlu0 %82
  %84 = vset.pattern.permute.xlu0 0
  %85 = vperm.xlu0 %84, %v66
  %v86 = vpop.permute.xlu0 %85
  %87 = vset.pattern.permute.xlu0 0
  %88 = vperm.xlu0 %87, %v67
  %v89 = vpop.permute.xlu0 %88
  %90 = vset.pattern.permute.xlu0 0
  %91 = vperm.xlu0 %90, %v68
  %v92 = vpop.permute.xlu0 %91
  %vm93 = vcmp.eq.s32.totalorder %v71, 1
  %vm94 = vcmp.eq.s32.totalorder %v74, 1
  %vm95 = vcmp.eq.s32.totalorder %v77, 1
  %vm96 = vcmp.eq.s32.totalorder %v80, 1
  %vm97 = vcmp.eq.s32.totalorder %v83, 1
  %vm98 = vcmp.eq.s32.totalorder %v86, 1
  %vm99 = vcmp.eq.s32.totalorder %v89, 1
  %vm100 = vcmp.eq.s32.totalorder %v92, 1
  %v101 = vsel %vm93, %v35, 0.0
  %v102 = vsel %vm94, %v36, 0.0
  %v103 = vsel %vm95, %v37, 0.0
  %v104 = vsel %vm96, %v38, 0.0
  %v105 = vsel %vm97, %v39, 0.0
  %v106 = vsel %vm98, %v40, 0.0
  %v107 = vsel %vm99, %v41, 0.0
  %v108 = vsel %vm100, %v42, 0.0
  %vm109 = vcmask 257024
  %v110 = vsel %vm109, %v101, 0.0
  %v111 = vsel %vm109, %v102, 0.0
  %v112 = vadd.f32 %v110, %v111
  %v113 = vsel %vm109, %v103, 0.0
  %v114 = vadd.f32 %v112, %v113
  %v115 = vsel %vm109, %v104, 0.0
  %v116 = vadd.f32 %v114, %v115
  %v117 = vsel %vm109, %v105, 0.0
  %v118 = vadd.f32 %v116, %v117
  %v119 = vsel %vm109, %v106, 0.0
  %v120 = vadd.f32 %v118, %v119
  %v121 = vsel %vm109, %v107, 0.0
  %v122 = vadd.f32 %v120, %v121
  %v123 = vsel %vm109, %v108, 0.0
  %v124 = vadd.f32 %v122, %v123
  %v125 = vadd.f32 %v60, %v124
  %126 = vst.msk [vmem:[#allocation2] sm:$0xf] %vm109, %v125
  %v127 = vld [vmem:[#allocation3] sm:$0xf]
  %vm128 = vcmask 3072
  %v129 = vsel %vm128, %v44, 0.0
  %v130 = vsel %vm128, %v45, 0.0
  %v131 = vadd.f32 %v129, %v130
  %v132 = vsel %vm128, %v46, 0.0
  %v133 = vadd.f32 %v131, %v132
  %v134 = vsel %vm128, %v47, 0.0
  %v135 = vadd.f32 %v133, %v134
  %v136 = vsel %vm128, %v48, 0.0
  %v137 = vadd.f32 %v135, %v136
  %v138 = vsel %vm128, %v49, 0.0
  %v139 = vadd.f32 %v137, %v138
  %v140 = vsel %vm128, %v50, 0.0
  %v141 = vadd.f32 %v139, %v140
  %v142 = vsel %vm128, %v51, 0.0
  %v143 = vadd.f32 %v141, %v142
  %v144 = vadd.f32 %v127, %v143
  %145 = vst.msk [vmem:[#allocation3] sm:$0xf] %vm128, %v144
  %v146 = vld [vmem:[#allocation4] sm:$0xf]
  %v147 = vsel %vm93, %v35, -inf
  %v148 = vsel %vm94, %v36, -inf
  %v149 = vsel %vm95, %v37, -inf
  %v150 = vsel %vm96, %v38, -inf
  %v151 = vsel %vm97, %v39, -inf
  %v152 = vsel %vm98, %v40, -inf
  %v153 = vsel %vm99, %v41, -inf
  %v154 = vsel %vm100, %v42, -inf
  %v155 = vsel %vm109, %v147, -inf
  %v156 = vsel %vm109, %v148, -inf
  %v157 = vsel %vm109, %v149, -inf
  %v158 = vsel %vm109, %v150, -inf
  %v159 = vsel %vm109, %v151, -inf
  %v160 = vmax.f32 %v155, %v159
  %v161 = vsel %vm109, %v152, -inf
  %v162 = vmax.f32 %v156, %v161
  %v163 = vsel %vm109, %v153, -inf
  %v164 = vmax.f32 %v157, %v163
  %v165 = vsel %vm109, %v154, -inf
  %v166 = vmax.f32 %v158, %v165
  %v167 = vmax.f32 %v160, %v162
  %v168 = vmax.f32 %v164, %v166
  %v169 = vmax.f32 %v167, %v168
  %v170 = vmax.f32 %v146, %v169
  %171 = vst.msk [vmem:[#allocation4] sm:$0xf] %vm109, %v170
  // Predicated region
  $region14: #{tpu_custom_call.1} parent=0 // pred_check
    %p172 = pneg %p11
  $region15: #{tpu_custom_call.1} parent=0 // pred_check_branch
    %174 = sbr.rel (%p172) target = $region17
  $region16: #{tpu_custom_call.1} parent=0 // pred_region
    %v175 = vld [vmem:[#allocation2] sm:$0xf]
    %v176 = vld [vmem:[#allocation3] sm:$0xf]
    %178 = vset.pattern.permute.xlu0 0
    %179 = vperm.xlu0 %178, %v176
    %v180 = vpop.permute.xlu0 %179
    %v182 = vrcp.pop %v180
    %v183 = vmul.f32 %v180, %v182
    %v184 = vsub.f32 1.0, %v183
    %v185 = vmul.f32 %v182, %v184
    %v186 = vadd.f32 %v182, %v185
    %vm187 = vweird.f32 %v180
    %vm188 = vweird.f32 %v182
    %vm189 = vmor %vm187, %vm188
    %v190 = vsel %vm189, %v182, %v186
    %v191 = vand.u32 2147483647, %v180
    %vm192 = vcmp.eq.f32.partialorder %v191, 8.507059e+37
    %v193 = vand.u32 %v180, 2147483648
    %v194 = vor.u32 1.1754944e-38, %v193
    %v195 = vsel %vm192, %v194, %v190
    %v196 = vmul.f32 %v175, %v195
    %v198 = vrot.slane %v196, 1
    %v199 = vrot.slane %v196, 2
    %v200 = vrot.slane %v196, 3
    %vm204 = vcmask 253952
    %205 = vst.msk [vmem:[%s2] sm:$0x1] %vm204, %v196
    %206 = vst.msk [vmem:[%s2 + $0x4] sm:$0x1] %vm204, %v198
    %207 = vst.msk [vmem:[%s2 + $0x8] sm:$0x1] %vm204, %v199
    %208 = vst.msk [vmem:[%s2 + $0xc] sm:$0x1] %vm204, %v200
    %v209 = vld [vmem:[#allocation4] sm:$0xf]
    %v211 = vrot.slane %v209, 1
    %v212 = vrot.slane %v209, 2
    %v213 = vrot.slane %v209, 3
    %217 = vst.msk [vmem:[%s2 + $0x2] sm:$0x1] %vm204, %v209
    %218 = vst.msk [vmem:[%s2 + $0x6] sm:$0x1] %vm204, %v211
    %219 = vst.msk [vmem:[%s2 + $0xa] sm:$0x1] %vm204, %v212
    %220 = vst.msk [vmem:[%s2 + $0xe] sm:$0x1] %vm204, %v213
  $region17: #{tpu_custom_call.1} parent=0 // pred_fallthru
    _
  // Predicated region
  $region18: #{tpu_custom_call.1} parent=0 // pred_check
    _
  $region19: #{tpu_custom_call.1} parent=0 // pred_check_branch
    %222 = sbr.rel (0) target = $region21
  $region20: #{tpu_custom_call.1} parent=0 // pred_region
    _
  $region21: #{tpu_custom_call.1} parent=0 // pred_fallthru
    _
  // Predicated region
  $region22: #{tpu_custom_call.1} parent=0 // pred_check
    _
  $region23: #{tpu_custom_call.1} parent=0 // pred_check_branch
    %224 = sbr.rel (0) target = $region25
  $region24: #{tpu_custom_call.1} parent=0 // pred_region
    _
  $region25: #{tpu_custom_call.1} parent=0 // pred_fallthru
    _

</llo_original>
